<compile_context>
chip_gen: v6e
topology: v6e:2x2x1
jax: 0.10.0
libtpu: 0.0.40
codegen_flags: <defaults>
</compile_context>

<pallas_src>
import functools

import jax
import jax.numpy as jnp
from jax import lax
from jax.experimental import pallas as pl
from jax.experimental.pallas import tpu as pltpu


def _round_up(x, m):
    return ((x + m - 1) // m) * m


def _pick_row_tile(HO, K, wpc, woco_pad, target, budget):
    """Largest multiple-of-8 row tile <= target that fits the VMEM budget."""
    cap = min(target, _round_up(HO, 8))
    th = max(8, (cap // 8) * 8)
    while th > 8:
        need = (2 * (th + K - 1) * wpc * 4      # double-buffered f32 input halo scratch
                + 2 * th * woco_pad * 4)        # double-buffered f32 output tile
        if need <= budget:
            break
        th -= 8
    return th


def _pick_w_tile(WO, C, CO, bytes_w, cap=2 << 20):
    """Largest divisor of WO whose per-tile block-diagonal weight stays <= cap."""
    for wt in range(WO, 0, -1):
        if WO % wt:
            continue
        if (wt * C) * (wt * CO) * bytes_w <= cap:
            return wt
    return 1


# ----------------------------------------------------------------------------
# Stride-1 fast path: lane-dense flattened layout, halo-DMA'd H row tiles.
# ----------------------------------------------------------------------------
def _make_s1_kernel(*, K, C, TH, HP8, WC, WTC, NWT, PAD, mxu_dtype):
    THK = TH + K - 1

    def kernel(x_hbm, wdw_ref, b1_ref, wbd_ref, b2_ref, o_ref, xbuf, sem):
        # x_hbm  : (N*HP8, WPC)   padded lane-dense input, left in HBM (pl.ANY)
        # wdw_ref: (K*K, WO*C)    depthwise weights, BN1-folded, lane-tiled
        # b1_ref : (1, WO*C)      BN1 bias
        # wbd_ref: (WT*C, WT*CO)  per-W-tile block-diagonal 1x1 weights, BN2-folded
        # b2_ref : (1, WOCO_pad)  BN2 bias, lane-tiled (+zero lane padding)
        # o_ref  : (1, TH, WOCO_pad) output row-tile, lane = w*CO + co
        # xbuf   : (2, TH+K-1, WPC) double-buffered halo scratch
        # sem    : DMA semaphores (2,)
        n = pl.program_id(0)
        i = pl.program_id(1)
        nh = pl.num_programs(1)
        slot = lax.rem(i, 2)

        def start_fetch(row_tile, slot_):
            r0 = pl.multiple_of(n * HP8 + row_tile * TH, 8)
            pltpu.make_async_copy(x_hbm.at[pl.ds(r0, THK)],
                                  xbuf.at[slot_], sem.at[slot_]).start()

        # Prime the very first halo slab of this batch.
        @pl.when(i == 0)
        def _():
            start_fetch(0, 0)

        # Prefetch the next row tile (same batch) while we compute this one.
        @pl.when(i + 1 < nh)
        def _():
            start_fetch(i + 1, 1 - slot)

        # Wait for the current tile's halo slab (issued at step i-1, or just above).
        r0 = pl.multiple_of(n * HP8 + i * TH, 8)
        pltpu.make_async_copy(x_hbm.at[pl.ds(r0, THK)],
                              xbuf.at[slot], sem.at[slot]).wait()

        xrows = xbuf[slot]                                   # (TH+K-1, WPC) f32

        # Depthwise conv: hoist the K lane shifts out of the K*K tap loop; each tap
        # is then a sublane-only slice + FMA (BN1 pre-folded into the weights).
        xs = [xrows[:, kw * C: kw * C + WC] for kw in range(K)]   # K windows (THK, WC)
        acc = xs[0][0:TH, :] * wdw_ref[0, :]
        for t in range(1, K * K):
            kh, kw = divmod(t, K)
            acc = acc + xs[kw][kh:kh + TH, :] * wdw_ref[t, :]

        # BN1 bias + ReLU (kept in f32 on the VPU — v5e-safe).
        y = jnp.maximum(acc + b1_ref[0, :], 0.0)             # (TH, WO*C)

        # Pointwise 1x1 conv: per-W-tile block-diagonal matmul on the MXU; inputs
        # cast to mxu_dtype (bf16 by default), f32 accumulation.
        parts = []
        for t in range(NWT):
            yt = y[:, t * WTC:(t + 1) * WTC].astype(mxu_dtype)
            parts.append(jnp.dot(yt, wbd_ref[...],
                                 preferred_element_type=jnp.float32))
        out = parts[0] if NWT == 1 else jnp.concatenate(parts, axis=-1)
        if PAD:  # static: pad output lanes up to a multiple of 128 (lane-dense store)
            out = jnp.concatenate([out, jnp.zeros((TH, PAD), jnp.float32)], axis=-1)
        o_ref[0] = (out + b2_ref[0, :]).astype(o_ref.dtype)

    return kernel


def _sepblock_s1(x_nhwc, w_dw_f, b1, w_pw_f, b2, *, K, HO, WO, C, CO, N, H, pad,
                 mxu_dtype):
    # ---- layout sizes --------------------------------------------------------
    WC = WO * C                                  # active depthwise lane width
    WOCO = WO * CO
    WOCO_pad = _round_up(WOCO, 128)              # lane-dense output stores (v5e 1-vst)
    WPC = _round_up((WO + K - 1) * C, 128)       # lane-dense padded-input slab width

    # ---- per-chip VMEM budgets ----------------------------------------------
    kind = jax.devices()[0].device_kind.lower()
    if "v7" in kind or "7x" in kind:
        budget, vmem_limit = 40 << 20, 48 << 20   # v7x: 64 MiB physical per TC
    elif any(v in kind for v in ("v4", "v5", "v6")):
        budget, vmem_limit = 80 << 20, 96 << 20   # 128 MiB physical VMEM
    else:
        budget, vmem_limit = 24 << 20, 32 << 20   # conservative fallback

    # ---- row tiling (big TH, remainder handled by padding HO up) -------------
    TH = _pick_row_tile(HO, K, WPC, WOCO_pad, target=256, budget=budget)
    HO_pad = _round_up(HO, TH)
    NH = HO_pad // TH
    HP8 = _round_up(HO_pad + K - 1, 8)           # per-batch padded rows, 8-aligned

    # ---- input: zero-pad + flatten to a lane-dense (N*HP8, WPC) HBM slab -----
    # TODO(synk): optionally store this slab in bf16 to halve HBM traffic on v6e/v7x.
    xp = jnp.pad(x_nhwc, ((0, 0), (pad, HP8 - H - pad), (pad, pad), (0, 0)))
    xf = xp.reshape(N, HP8, -1)
    xf = jnp.pad(xf, ((0, 0), (0, 0), (0, WPC - xf.shape[-1])))
    x2d = xf.reshape(N * HP8, WPC)

    # ---- weights: BN folded, lane-tiled; per-W-tile block-diagonal pointwise --
    wdw_t = jnp.tile(w_dw_f.reshape(K * K, C), (1, WO)).astype(jnp.float32)
    b1_t = jnp.tile(b1, WO).reshape(1, WC).astype(jnp.float32)

    WT = _pick_w_tile(WO, C, CO, jnp.dtype(mxu_dtype).itemsize)
    NWT = WO // WT
    WTC, WTCO = WT * C, WT * CO
    wbd = jnp.einsum("vw,cd->vcwd", jnp.eye(WT, dtype=jnp.float32), w_pw_f)
    wbd = wbd.reshape(WTC, WTCO).astype(mxu_dtype)

    b2_t = jnp.pad(jnp.tile(b2, WO), (0, WOCO_pad - WOCO))
    b2_t = b2_t.reshape(1, WOCO_pad).astype(jnp.float32)

    kernel = _make_s1_kernel(K=K, C=C, TH=TH, HP8=HP8, WC=WC, WTC=WTC, NWT=NWT,
                             PAD=WOCO_pad - WOCO, mxu_dtype=mxu_dtype)

    grid_spec = pltpu.PrefetchScalarGridSpec(
        num_scalar_prefetch=0,
        grid=(N, NH),
        in_specs=[
            pl.BlockSpec(memory_space=pl.ANY),                       # manual halo DMA
            pl.BlockSpec((K * K, WC), lambda n, i: (0, 0)),
            pl.BlockSpec((1, WC), lambda n, i: (0, 0)),
            pl.BlockSpec((WTC, WTCO), lambda n, i: (0, 0)),
            pl.BlockSpec((1, WOCO_pad), lambda n, i: (0, 0)),
        ],
        out_specs=pl.BlockSpec((1, TH, WOCO_pad), lambda n, i: (n, i, 0)),
        scratch_shapes=[
            pltpu.VMEM((2, TH + K - 1, WPC), jnp.float32),
            pltpu.SemaphoreType.DMA((2,)),
        ],
    )

    out_flat = pl.pallas_call(
        kernel,
        out_shape=jax.ShapeDtypeStruct((N, HO_pad, WOCO_pad), jnp.float32),
        grid_spec=grid_spec,
        compiler_params=pltpu.CompilerParams(
            # N is megacore-parallel; the H axis must stay sequential ("arbitrary")
            # because the double-buffered halo DMA carries state across i steps.
            dimension_semantics=("parallel", "arbitrary"),
            vmem_limit_bytes=vmem_limit),
    )(x2d, wdw_t, b1_t, wbd, b2_t)

    # Layout plumbing back to NHWC (pure slice + reshape; lane = w*CO + co).
    return out_flat[:, :HO, :WOCO].reshape(N, HO, WO, CO)


# ----------------------------------------------------------------------------
# General stride>1 fallback (not exercised by the demo): channels stay in the
# lane dim; pointwise conv is an unrolled VPU FMA over C (no tiny MXU dot).
# TODO(synk): port the lane-dense layout + halo H tiling to the strided path.
# ----------------------------------------------------------------------------
def _make_strided_kernel(K, S, HO, WO, C, CO):
    def kernel(xp_ref, wdw_ref, b1_ref, wpw_ref, b2_ref, o_ref):
        xp = xp_ref[0]                                            # (Hp, Wp, C)
        acc = None
        for kh in range(K):
            for kw in range(K):
                patch = lax.slice(
                    xp, (kh, kw, 0),
                    (kh + (HO - 1) * S + 1, kw + (WO - 1) * S + 1, C),
                    (S, S, 1))
                term = patch * wdw_ref[kh * K + kw, :]
                acc = term if acc is None else acc + term
        y = jnp.maximum(acc + b1_ref[0, :], 0.0)                  # (HO, WO, C)
        out = y[:, :, 0:1] * wpw_ref[0, :]
        for c in range(1, C):
            out = out + y[:, :, c:c + 1] * wpw_ref[c, :]
        o_ref[0] = (out + b2_ref[0, :]).astype(o_ref.dtype)

    return kernel


def _sepblock_strided(xp, w_dw_f, b1, w_pw_f, b2, *, K, S, HO, WO, C, CO, Hp, Wp, N):
    kernel = _make_strided_kernel(K, S, HO, WO, C, CO)
    grid_spec = pltpu.PrefetchScalarGridSpec(
        num_scalar_prefetch=0,
        grid=(N,),
        in_specs=[
            pl.BlockSpec((1, Hp, Wp, C), lambda n: (n, 0, 0, 0)),
            pl.BlockSpec((K * K, C), lambda n: (0, 0)),
            pl.BlockSpec((1, C), lambda n: (0, 0)),
            pl.BlockSpec((C, CO), lambda n: (0, 0)),
            pl.BlockSpec((1, CO), lambda n: (0, 0)),
        ],
        out_specs=pl.BlockSpec((1, HO, WO, CO), lambda n: (n, 0, 0, 0)),
    )
    return pl.pallas_call(
        kernel,
        out_shape=jax.ShapeDtypeStruct((N, HO, WO, CO), jnp.float32),
        grid_spec=grid_spec,
        compiler_params=pltpu.CompilerParams(
            dimension_semantics=("parallel",),
            vmem_limit_bytes=32 * 1024 * 1024),
    )(xp, w_dw_f.reshape(K * K, C), b1.reshape(1, C), w_pw_f, b2.reshape(1, CO))


# ----------------------------------------------------------------------------
# Public wrapper: folds BN into the weights and dispatches on stride.
# ----------------------------------------------------------------------------
def sepblock_pallas(x_nhwc, w_dw, bn1_scale, bn1_bias, w_pw, bn2_scale, bn2_bias,
                    *, kernel_size, stride, mxu_dtype=jnp.bfloat16):
    """x_nhwc: (N, H, W, C) float32. Returns (N, HO, WO, CO) float32.

    mxu_dtype: dtype the pointwise-matmul operands are cast to before the MXU
    (bf16 by default per v6e/v7x guidance; pass jnp.float32 for exact math).
    """
    N, H, W, C = x_nhwc.shape
    K, S = kernel_size, stride
    assert K % 2 == 1, "padding=(K-1)//2 only matches PyTorch SepBlock for odd K"
    pad = (K - 1) // 2                     # matches PyTorch SepBlock
    HO = (H + 2 * pad - K) // S + 1
    WO = (W + 2 * pad - K) // S + 1
    CO = w_pw.shape[1]

    # One-time (wrapper-side) BN folding: BN1 scale into depthwise weights,
    # BN2 scale into pointwise weights; only the bias adds remain in-kernel.
    w_dw_f = w_dw * bn1_scale                   # (K, K, C)
    w_pw_f = w_pw * bn2_scale[None, :]          # (C, CO)

    if S == 1:
        return _sepblock_s1(x_nhwc, w_dw_f, bn1_bias, w_pw_f, bn2_bias,
                            K=K, HO=HO, WO=WO, C=C, CO=CO, N=N, H=H, pad=pad,
                            mxu_dtype=mxu_dtype)

    Hp, Wp = H + 2 * pad, W + 2 * pad
    xp = jnp.pad(x_nhwc, ((0, 0), (pad, pad), (pad, pad), (0, 0)))
    return _sepblock_strided(xp, w_dw_f, bn1_bias, w_pw_f, bn2_bias,
                             K=K, S=S, HO=HO, WO=WO, C=C, CO=CO, Hp=Hp, Wp=Wp, N=N)


# ----------------------------------------------------------------------------
# Pure-JAX reference (lax conv, unfolded BN) for the correctness check.
# ----------------------------------------------------------------------------
def sepblock_reference(x_nhwc, w_dw, bn1_scale, bn1_bias, w_pw, bn2_scale, bn2_bias,
                       *, kernel_size, stride):
    N, H, W, C = x_nhwc.shape
    K = kernel_size
    pad = (K - 1) // 2
    dw_hwio = w_dw.reshape(K, K, 1, C)
    y = lax.conv_general_dilated(
        x_nhwc, dw_hwio,
        window_strides=(stride, stride),
        padding=((pad, pad), (pad, pad)),
        dimension_numbers=("NHWC", "HWIO", "NHWC"),
        feature_group_count=C,
    )
    y = jnp.maximum(y * bn1_scale + bn1_bias, 0.0)
    out = jnp.einsum("nhwc,cd->nhwd", y, w_pw)
    out = out * bn2_scale + bn2_bias
    return out


if __name__ == "__main__":
    # SepBlock hyperparameters (small, consistent with the module).
    N, C_IN, H, W = 2, 4, 16, 16
    C_OUT = 8
    KERNEL_SIZE = 3
    STRIDE = 1          # conv1 stride; conv2 is always 1x1 stride-1
    EPS = 1e-5

    key = jax.random.PRNGKey(0)
    k_x, k_dw, k_pw, k_bn = jax.random.split(key, 4)

    # Input, PyTorch-style NCHW, then transposed to NHWC for the kernel.
    x_nchw = jax.random.normal(k_x, (N, C_IN, H, W), dtype=jnp.float32)
    x_nhwc = jnp.transpose(x_nchw, (0, 2, 3, 1))

    # conv1: depthwise Conv2d(C_IN, C_IN, K, groups=C_IN), kaiming-normal-ish init.
    fan_out_dw = KERNEL_SIZE * KERNEL_SIZE * 1
    std_dw = (2.0 / fan_out_dw) ** 0.5
    w_dw = std_dw * jax.random.normal(k_dw, (KERNEL_SIZE, KERNEL_SIZE, C_IN),
                                      dtype=jnp.float32)

    # conv2: pointwise Conv2d(C_IN, C_OUT, 1). PyTorch (C_OUT, C_IN, 1, 1) -> (C_IN, C_OUT).
    fan_out_pw = 1 * 1 * C_OUT
    std_pw = (2.0 / fan_out_pw) ** 0.5
    w_pw = std_pw * jax.random.normal(k_pw, (C_IN, C_OUT), dtype=jnp.float32)

    # Deterministic BN parameters (inference-mode folding; SyncBN == BN here).
    gamma1 = 1.0 + 0.10 * jnp.arange(C_IN, dtype=jnp.float32)
    beta1 = 0.05 * jnp.arange(C_IN, dtype=jnp.float32)
    rmean1 = 0.02 * jnp.arange(C_IN, dtype=jnp.float32)
    rvar1 = 1.0 + 0.03 * jnp.arange(C_IN, dtype=jnp.float32)
    bn1_scale = gamma1 / jnp.sqrt(rvar1 + EPS)
    bn1_bias = beta1 - rmean1 * bn1_scale

    gamma2 = 1.0 + 0.07 * jnp.arange(C_OUT, dtype=jnp.float32)
    beta2 = -0.03 * jnp.arange(C_OUT, dtype=jnp.float32)
    rmean2 = 0.01 * jnp.arange(C_OUT, dtype=jnp.float32)
    rvar2 = 1.0 + 0.05 * jnp.arange(C_OUT, dtype=jnp.float32)
    bn2_scale = gamma2 / jnp.sqrt(rvar2 + EPS)
    bn2_bias = beta2 - rmean2 * bn2_scale

    args = (x_nhwc, w_dw, bn1_scale, bn1_bias, w_pw, bn2_scale, bn2_bias)
    run = functools.partial(sepblock_pallas, kernel_size=KERNEL_SIZE, stride=STRIDE)

    # Default (perf) path: bf16 MXU operands, f32 accumulation.
    out = jax.block_until_ready(run(*args))

    # Exact path: f32 end-to-end, checked tightly against the lax reference.
    out_f32 = jax.block_until_ready(run(*args, mxu_dtype=jnp.float32))

    ref = sepblock_reference(*args, kernel_size=KERNEL_SIZE, stride=STRIDE)
    assert out.shape == (N, H // STRIDE, W // STRIDE, C_OUT), out.shape
    assert jnp.allclose(out_f32, ref, atol=1e-4, rtol=1e-4), \
        float(jnp.max(jnp.abs(out_f32 - ref)))
    # bf16 MXU operands (f32 accumulate) introduce ~1e-2-level rounding vs f32 ref.
    assert jnp.allclose(out, ref, atol=5e-2, rtol=5e-2), \
        float(jnp.max(jnp.abs(out - ref)))

    print("KERNEL_OK")
</pallas_src>

<mosaic_0001>
module attributes {stable_mosaic.version = 11 : i64} {
  func.func @kernel(%arg0: i32, %arg1: i32, %arg2: memref<48x128xf32, #tpu.memory_space<any>>, %arg3: memref<9x64xf32, #tpu.memory_space<vmem>>, %arg4: memref<1x64xf32, #tpu.memory_space<vmem>>, %arg5: memref<64x128xbf16, #tpu.memory_space<vmem>>, %arg6: memref<1x128xf32, #tpu.memory_space<vmem>>, %arg7: memref<1x16x128xf32, #tpu.memory_space<vmem>>, %arg8: memref<2x18x128xf32, #tpu.memory_space<vmem>>, %arg9: memref<2x!tpu.dma_semaphore, #tpu.memory_space<semaphore_mem>>) attributes {dimension_semantics = [#tpu.dimension_semantics<parallel>, #tpu.dimension_semantics<arbitrary>], iteration_bounds = array<i64: 2, 1>, scalar_prefetch = 0 : i64, scratch_operands = 2 : i64, tpu.core_type = #tpu.core_type<tc>, window_params = [{}, {pipeline_mode = #tpu.pipeline_mode<synchronous>, transform_indices = @transform_1, window_bounds = array<i64: 9, 64>}, {pipeline_mode = #tpu.pipeline_mode<synchronous>, transform_indices = @transform_2, window_bounds = array<i64: 1, 64>}, {pipeline_mode = #tpu.pipeline_mode<synchronous>, transform_indices = @transform_3, window_bounds = array<i64: 64, 128>}, {pipeline_mode = #tpu.pipeline_mode<synchronous>, transform_indices = @transform_4, window_bounds = array<i64: 1, 128>}, {transform_indices = @transform_5, window_bounds = array<i64: 1, 16, 128>}]} {
    %c2_i32 = arith.constant 2 : i32
    %0 = arith.remsi %arg1, %c2_i32 : i32
    %c0_i32 = arith.constant 0 : i32
    %1 = arith.cmpi eq, %arg1, %c0_i32 : i32
    %2 = arith.extui %1 : i1 to i32
    %c0_i32_0 = arith.constant 0 : i32
    %3 = arith.cmpi ne, %2, %c0_i32_0 : i32
    scf.if %3 {
      %c24_i32_27 = arith.constant 24 : i32
      %103 = arith.muli %arg0, %c24_i32_27 : i32
      %c0_i32_28 = arith.constant 0 : i32
      %104 = arith.addi %103, %c0_i32_28 : i32
      %105 = tpu.assume_multiple %104, 8 : i32
      %c0_i32_29 = arith.constant 0 : i32
      %c0_i32_30 = arith.constant 0 : i32
      %c0_i32_31 = arith.constant 0 : i32
      %106 = tpu.memref_slice %arg2[%105, %c0_i32_31] : memref<48x128xf32, #tpu.memory_space<any>> -> memref<18x128xf32, #tpu.memory_space<any>>
      %c0_i32_32 = arith.constant 0 : i32
      %c0_i32_33 = arith.constant 0 : i32
      %107 = tpu.memref_slice %arg8[%c0_i32_29, %c0_i32_32, %c0_i32_33] : memref<2x18x128xf32, #tpu.memory_space<vmem>> -> memref<1x18x128xf32, #tpu.memory_space<vmem>>
      %108 = tpu.memref_squeeze %107 : memref<1x18x128xf32, #tpu.memory_space<vmem>> -> memref<18x128xf32, #tpu.memory_space<vmem>>
      %109 = tpu.memref_slice %arg9[%c0_i32_30] : memref<2x!tpu.dma_semaphore, #tpu.memory_space<semaphore_mem>> -> memref<1x!tpu.dma_semaphore, #tpu.memory_space<semaphore_mem>>
      %110 = tpu.memref_squeeze %109 : memref<1x!tpu.dma_semaphore, #tpu.memory_space<semaphore_mem>> -> memref<!tpu.dma_semaphore, #tpu.memory_space<semaphore_mem>>
      tpu.enqueue_dma source(%106 : memref<18x128xf32, #tpu.memory_space<any>>) target(%108 : memref<18x128xf32, #tpu.memory_space<vmem>>) target_semaphore(%110 : memref<!tpu.dma_semaphore, #tpu.memory_space<semaphore_mem>>)
    } else {
    }
    %c1_i32 = arith.constant 1 : i32
    %4 = arith.addi %arg1, %c1_i32 : i32
    %c1_i32_1 = arith.constant 1 : i32
    %5 = arith.cmpi slt, %4, %c1_i32_1 : i32
    %6 = arith.extui %5 : i1 to i32
    %c0_i32_2 = arith.constant 0 : i32
    %7 = arith.cmpi ne, %6, %c0_i32_2 : i32
    scf.if %7 {
      %c1_i32_27 = arith.constant 1 : i32
      %103 = arith.addi %arg1, %c1_i32_27 : i32
      %c1_i32_28 = arith.constant 1 : i32
      %104 = arith.subi %c1_i32_28, %0 : i32
      %c24_i32_29 = arith.constant 24 : i32
      %105 = arith.muli %arg0, %c24_i32_29 : i32
      %c16_i32_30 = arith.constant 16 : i32
      %106 = arith.muli %103, %c16_i32_30 : i32
      %107 = arith.addi %105, %106 : i32
      %108 = tpu.assume_multiple %107, 8 : i32
      %c0_i32_31 = arith.constant 0 : i32
      %109 = tpu.memref_slice %arg2[%108, %c0_i32_31] : memref<48x128xf32, #tpu.memory_space<any>> -> memref<18x128xf32, #tpu.memory_space<any>>
      %c0_i32_32 = arith.constant 0 : i32
      %c0_i32_33 = arith.constant 0 : i32
      %110 = tpu.memref_slice %arg8[%104, %c0_i32_32, %c0_i32_33] : memref<2x18x128xf32, #tpu.memory_space<vmem>> -> memref<1x18x128xf32, #tpu.memory_space<vmem>>
      %111 = tpu.memref_squeeze %110 : memref<1x18x128xf32, #tpu.memory_space<vmem>> -> memref<18x128xf32, #tpu.memory_space<vmem>>
      %112 = tpu.memref_slice %arg9[%104] : memref<2x!tpu.dma_semaphore, #tpu.memory_space<semaphore_mem>> -> memref<1x!tpu.dma_semaphore, #tpu.memory_space<semaphore_mem>>
      %113 = tpu.memref_squeeze %112 : memref<1x!tpu.dma_semaphore, #tpu.memory_space<semaphore_mem>> -> memref<!tpu.dma_semaphore, #tpu.memory_space<semaphore_mem>>
      tpu.enqueue_dma source(%109 : memref<18x128xf32, #tpu.memory_space<any>>) target(%111 : memref<18x128xf32, #tpu.memory_space<vmem>>) target_semaphore(%113 : memref<!tpu.dma_semaphore, #tpu.memory_space<semaphore_mem>>)
    } else {
    }
    %c24_i32 = arith.constant 24 : i32
    %8 = arith.muli %arg0, %c24_i32 : i32
    %c16_i32 = arith.constant 16 : i32
    %9 = arith.muli %arg1, %c16_i32 : i32
    %10 = arith.addi %8, %9 : i32
    %11 = tpu.assume_multiple %10, 8 : i32
    %c0_i32_3 = arith.constant 0 : i32
    %12 = tpu.memref_slice %arg2[%11, %c0_i32_3] : memref<48x128xf32, #tpu.memory_space<any>> -> memref<18x128xf32, #tpu.memory_space<any>>
    %c0_i32_4 = arith.constant 0 : i32
    %c0_i32_5 = arith.constant 0 : i32
    %13 = tpu.memref_slice %arg8[%0, %c0_i32_4, %c0_i32_5] : memref<2x18x128xf32, #tpu.memory_space<vmem>> -> memref<1x18x128xf32, #tpu.memory_space<vmem>>
    %14 = tpu.memref_squeeze %13 : memref<1x18x128xf32, #tpu.memory_space<vmem>> -> memref<18x128xf32, #tpu.memory_space<vmem>>
    %15 = tpu.memref_slice %arg9[%0] : memref<2x!tpu.dma_semaphore, #tpu.memory_space<semaphore_mem>> -> memref<1x!tpu.dma_semaphore, #tpu.memory_space<semaphore_mem>>
    %16 = tpu.memref_squeeze %15 : memref<1x!tpu.dma_semaphore, #tpu.memory_space<semaphore_mem>> -> memref<!tpu.dma_semaphore, #tpu.memory_space<semaphore_mem>>
    tpu.wait_dma2 semaphore(%16 : memref<!tpu.dma_semaphore, #tpu.memory_space<semaphore_mem>>) src(%12 : memref<18x128xf32, #tpu.memory_space<any>>) dst(%14 : memref<18x128xf32, #tpu.memory_space<vmem>>)
    %17 = arith.index_cast %0 : i32 to index
    %c0 = arith.constant 0 : index
    %c0_6 = arith.constant 0 : index
    %18 = vector.load %arg8[%17, %c0, %c0_6] : memref<2x18x128xf32, #tpu.memory_space<vmem>>, vector<1x18x128xf32>
    %19 = vector.shape_cast %18 : vector<1x18x128xf32> to vector<18x128xf32>
    %20 = vector.extract_strided_slice %19 {offsets = [0, 0], sizes = [18, 64], strides = [1, 1]} : vector<18x128xf32> to vector<18x64xf32>
    %21 = vector.extract_strided_slice %19 {offsets = [0, 4], sizes = [18, 64], strides = [1, 1]} : vector<18x128xf32> to vector<18x64xf32>
    %22 = vector.extract_strided_slice %19 {offsets = [0, 8], sizes = [18, 64], strides = [1, 1]} : vector<18x128xf32> to vector<18x64xf32>
    %23 = vector.extract_strided_slice %20 {offsets = [0, 0], sizes = [16, 64], strides = [1, 1]} : vector<18x64xf32> to vector<16x64xf32>
    %c0_7 = arith.constant 0 : index
    %c0_8 = arith.constant 0 : index
    %24 = vector.load %arg3[%c0_7, %c0_8] : memref<9x64xf32, #tpu.memory_space<vmem>>, vector<1x64xf32>
    %25 = vector.shape_cast %24 : vector<1x64xf32> to vector<64xf32>
    %26 = vector.shape_cast %25 : vector<64xf32> to vector<1x64xf32>
    %27 = vector.broadcast %26 : vector<1x64xf32> to vector<16x64xf32>
    %28 = arith.mulf %23, %27 : vector<16x64xf32>
    %29 = vector.extract_strided_slice %21 {offsets = [0, 0], sizes = [16, 64], strides = [1, 1]} : vector<18x64xf32> to vector<16x64xf32>
    %c1 = arith.constant 1 : index
    %c0_9 = arith.constant 0 : index
    %30 = vector.load %arg3[%c1, %c0_9] : memref<9x64xf32, #tpu.memory_space<vmem>>, vector<1x64xf32>
    %31 = vector.shape_cast %30 : vector<1x64xf32> to vector<64xf32>
    %32 = vector.shape_cast %31 : vector<64xf32> to vector<1x64xf32>
    %33 = vector.broadcast %32 : vector<1x64xf32> to vector<16x64xf32>
    %34 = arith.mulf %29, %33 : vector<16x64xf32>
    %35 = arith.addf %28, %34 : vector<16x64xf32>
    %36 = vector.extract_strided_slice %22 {offsets = [0, 0], sizes = [16, 64], strides = [1, 1]} : vector<18x64xf32> to vector<16x64xf32>
    %c2 = arith.constant 2 : index
    %c0_10 = arith.constant 0 : index
    %37 = vector.load %arg3[%c2, %c0_10] : memref<9x64xf32, #tpu.memory_space<vmem>>, vector<1x64xf32>
    %38 = vector.shape_cast %37 : vector<1x64xf32> to vector<64xf32>
    %39 = vector.shape_cast %38 : vector<64xf32> to vector<1x64xf32>
    %40 = vector.broadcast %39 : vector<1x64xf32> to vector<16x64xf32>
    %41 = arith.mulf %36, %40 : vector<16x64xf32>
    %42 = arith.addf %35, %41 : vector<16x64xf32>
    %43 = vector.extract_strided_slice %20 {offsets = [1, 0], sizes = [16, 64], strides = [1, 1]} : vector<18x64xf32> to vector<16x64xf32>
    %c3 = arith.constant 3 : index
    %c0_11 = arith.constant 0 : index
    %44 = vector.load %arg3[%c3, %c0_11] : memref<9x64xf32, #tpu.memory_space<vmem>>, vector<1x64xf32>
    %45 = vector.shape_cast %44 : vector<1x64xf32> to vector<64xf32>
    %46 = vector.shape_cast %45 : vector<64xf32> to vector<1x64xf32>
    %47 = vector.broadcast %46 : vector<1x64xf32> to vector<16x64xf32>
    %48 = arith.mulf %43, %47 : vector<16x64xf32>
    %49 = arith.addf %42, %48 : vector<16x64xf32>
    %50 = vector.extract_strided_slice %21 {offsets = [1, 0], sizes = [16, 64], strides = [1, 1]} : vector<18x64xf32> to vector<16x64xf32>
    %c4 = arith.constant 4 : index
    %c0_12 = arith.constant 0 : index
    %51 = vector.load %arg3[%c4, %c0_12] : memref<9x64xf32, #tpu.memory_space<vmem>>, vector<1x64xf32>
    %52 = vector.shape_cast %51 : vector<1x64xf32> to vector<64xf32>
    %53 = vector.shape_cast %52 : vector<64xf32> to vector<1x64xf32>
    %54 = vector.broadcast %53 : vector<1x64xf32> to vector<16x64xf32>
    %55 = arith.mulf %50, %54 : vector<16x64xf32>
    %56 = arith.addf %49, %55 : vector<16x64xf32>
    %57 = vector.extract_strided_slice %22 {offsets = [1, 0], sizes = [16, 64], strides = [1, 1]} : vector<18x64xf32> to vector<16x64xf32>
    %c5 = arith.constant 5 : index
    %c0_13 = arith.constant 0 : index
    %58 = vector.load %arg3[%c5, %c0_13] : memref<9x64xf32, #tpu.memory_space<vmem>>, vector<1x64xf32>
    %59 = vector.shape_cast %58 : vector<1x64xf32> to vector<64xf32>
    %60 = vector.shape_cast %59 : vector<64xf32> to vector<1x64xf32>
    %61 = vector.broadcast %60 : vector<1x64xf32> to vector<16x64xf32>
    %62 = arith.mulf %57, %61 : vector<16x64xf32>
    %63 = arith.addf %56, %62 : vector<16x64xf32>
    %64 = vector.extract_strided_slice %20 {offsets = [2, 0], sizes = [16, 64], strides = [1, 1]} : vector<18x64xf32> to vector<16x64xf32>
    %c6 = arith.constant 6 : index
    %c0_14 = arith.constant 0 : index
    %65 = vector.load %arg3[%c6, %c0_14] : memref<9x64xf32, #tpu.memory_space<vmem>>, vector<1x64xf32>
    %66 = vector.shape_cast %65 : vector<1x64xf32> to vector<64xf32>
    %67 = vector.shape_cast %66 : vector<64xf32> to vector<1x64xf32>
    %68 = vector.broadcast %67 : vector<1x64xf32> to vector<16x64xf32>
    %69 = arith.mulf %64, %68 : vector<16x64xf32>
    %70 = arith.addf %63, %69 : vector<16x64xf32>
    %71 = vector.extract_strided_slice %21 {offsets = [2, 0], sizes = [16, 64], strides = [1, 1]} : vector<18x64xf32> to vector<16x64xf32>
    %c7 = arith.constant 7 : index
    %c0_15 = arith.constant 0 : index
    %72 = vector.load %arg3[%c7, %c0_15] : memref<9x64xf32, #tpu.memory_space<vmem>>, vector<1x64xf32>
    %73 = vector.shape_cast %72 : vector<1x64xf32> to vector<64xf32>
    %74 = vector.shape_cast %73 : vector<64xf32> to vector<1x64xf32>
    %75 = vector.broadcast %74 : vector<1x64xf32> to vector<16x64xf32>
    %76 = arith.mulf %71, %75 : vector<16x64xf32>
    %77 = arith.addf %70, %76 : vector<16x64xf32>
    %78 = vector.extract_strided_slice %22 {offsets = [2, 0], sizes = [16, 64], strides = [1, 1]} : vector<18x64xf32> to vector<16x64xf32>
    %c8 = arith.constant 8 : index
    %c0_16 = arith.constant 0 : index
    %79 = vector.load %arg3[%c8, %c0_16] : memref<9x64xf32, #tpu.memory_space<vmem>>, vector<1x64xf32>
    %80 = vector.shape_cast %79 : vector<1x64xf32> to vector<64xf32>
    %81 = vector.shape_cast %80 : vector<64xf32> to vector<1x64xf32>
    %82 = vector.broadcast %81 : vector<1x64xf32> to vector<16x64xf32>
    %83 = arith.mulf %78, %82 : vector<16x64xf32>
    %84 = arith.addf %77, %83 : vector<16x64xf32>
    %c0_17 = arith.constant 0 : index
    %c0_18 = arith.constant 0 : index
    %85 = vector.load %arg4[%c0_17, %c0_18] : memref<1x64xf32, #tpu.memory_space<vmem>>, vector<1x64xf32>
    %86 = vector.shape_cast %85 : vector<1x64xf32> to vector<64xf32>
    %87 = vector.shape_cast %86 : vector<64xf32> to vector<1x64xf32>
    %88 = vector.broadcast %87 : vector<1x64xf32> to vector<16x64xf32>
    %89 = arith.addf %84, %88 : vector<16x64xf32>
    %cst = arith.constant 0.000000e+00 : f32
    %90 = vector.broadcast %cst : f32 to vector<16x64xf32>
    %91 = arith.maximumf %89, %90 : vector<16x64xf32>
    %92 = arith.truncf %91 : vector<16x64xf32> to vector<16x64xbf16>
    %c0_19 = arith.constant 0 : index
    %c0_20 = arith.constant 0 : index
    %93 = vector.load %arg5[%c0_19, %c0_20] : memref<64x128xbf16, #tpu.memory_space<vmem>>, vector<64x128xbf16>
    %cst_21 = arith.constant dense<0.000000e+00> : vector<16x128xf32>
    %94 = tpu.matmul %92, %93, %cst_21 {dimension_numbers = #tpu.dot_dimension_numbers<[1], [0], [0], [1], [0, 0, 1, 1], [], []>} : vector<16x64xbf16>, vector<64x128xbf16>, vector<16x128xf32> -> vector<16x128xf32>
    %c0_22 = arith.constant 0 : index
    %c0_23 = arith.constant 0 : index
    %95 = vector.load %arg6[%c0_22, %c0_23] : memref<1x128xf32, #tpu.memory_space<vmem>>, vector<1x128xf32>
    %96 = vector.shape_cast %95 : vector<1x128xf32> to vector<128xf32>
    %97 = vector.shape_cast %96 : vector<128xf32> to vector<1x128xf32>
    %98 = vector.broadcast %97 : vector<1x128xf32> to vector<16x128xf32>
    %99 = arith.addf %94, %98 : vector<16x128xf32>
    %c0_24 = arith.constant 0 : index
    %c0_25 = arith.constant 0 : index
    %c0_26 = arith.constant 0 : index
    %100 = vector.load %arg7[%c0_24, %c0_25, %c0_26] : memref<1x16x128xf32, #tpu.memory_space<vmem>>, vector<1x16x128xf32>
    %101 = vector.shape_cast %100 : vector<1x16x128xf32> to vector<16x128xf32>
    %102 = vector.shape_cast %99 : vector<16x128xf32> to vector<1x16x128xf32>
    tpu.vector_store %arg7[%c0_24, %c0_25, %c0_26], %102 {strides = array<i32>} : memref<1x16x128xf32, #tpu.memory_space<vmem>>, vector<1x16x128xf32>,
    return
  }
  func.func @transform_1(%arg0: i32, %arg1: i32) -> (i32, i32) {
    %c0_i32 = arith.constant 0 : i32
    %c0_i32_0 = arith.constant 0 : i32
    %c0_i32_1 = arith.constant 0 : i32
    return %c0_i32, %c0_i32_0 : i32, i32
  }
  func.func @transform_2(%arg0: i32, %arg1: i32) -> (i32, i32) {
    %c0_i32 = arith.constant 0 : i32
    %c0_i32_0 = arith.constant 0 : i32
    %c0_i32_1 = arith.constant 0 : i32
    return %c0_i32, %c0_i32_0 : i32, i32
  }
  func.func @transform_3(%arg0: i32, %arg1: i32) -> (i32, i32) {
    %c0_i32 = arith.constant 0 : i32
    %c0_i32_0 = arith.constant 0 : i32
    %c0_i32_1 = arith.constant 0 : i32
    return %c0_i32, %c0_i32_0 : i32, i32
  }
  func.func @transform_4(%arg0: i32, %arg1: i32) -> (i32, i32) {
    %c0_i32 = arith.constant 0 : i32
    %c0_i32_0 = arith.constant 0 : i32
    %c0_i32_1 = arith.constant 0 : i32
    return %c0_i32, %c0_i32_0 : i32, i32
  }
  func.func @transform_5(%arg0: i32, %arg1: i32) -> (i32, i32, i32) {
    %c0_i32 = arith.constant 0 : i32
    %c0_i32_0 = arith.constant 0 : i32
    return %arg0, %arg1, %c0_i32 : i32, i32, i32
  }
}

</mosaic_0001>

<llo_original>
// kernel: tpu_custom_call.1
$region0: #{tpu_custom_call.1}
  #allocation0 [shape = 'u32[]', space=smem, size = 0x4, offset = 0x4, fixed_abs, tag = 'smem constant byte address 0x4 - core index']
  #allocation1 [shape = 'u32[144,128]{1,0:T(1,128)}', space=vmem, size = 0x12000, scoped, tag = 'internal scratch']
  #allocation2 [shape = 'f32[2,18,128]{2,1,0:T(8,128)}', space=vmem, size = 0x6000, scoped, tag = 'scratch operand']
  #allocation3 [shape = 's32[2]{0}', space=sflag, size = 0x8, scoped, tag = 'scratch operand']
  #allocation10 [shape = 's32[]', space=sflag, size = 0x4, offset = 0, fixed_abs, tag = 'sflag constant byte address 0x0 - dummy sync flag']
  #allocation11 [shape = 's32[]', space=sflag, size = 0x4, offset = 0, fixed_abs, tag = 'sflag constant byte address 0x0 - dummy sync flag']
  #allocation12 [shape = 'u32[]', space=smem, size = 0x4, offset = 0x44, fixed_abs, tag = 'smem constant byte address 0x44 - assertion arg 0']
  #allocation13 [shape = 'u32[]', space=smem, size = 0x4, offset = 0x48, fixed_abs, tag = 'smem constant byte address 0x48 - assertion arg 1']
  #allocation14 [shape = 's32[]', space=sflag, size = 0x4, offset = 0, fixed_abs, tag = 'sflag constant byte address 0x0 - dummy sync flag']
  #allocation15 [shape = 's32[]', space=sflag, size = 0x4, offset = 0, fixed_abs, tag = 'sflag constant byte address 0x0 - dummy sync flag']
  %s0 = inlined_call_operand.hbm [shape: f32[48,128], index: 0, kind: input, shape index: {}]
  %s1 = inlined_call_operand.hbm [shape: f32[9,64], index: 1, kind: input, shape index: {}]
  %s2 = inlined_call_operand.vmem [shape: f32[1,64], index: 2, kind: input, shape index: {}]
  %s3 = inlined_call_operand.hbm [shape: bf16[64,128], index: 3, kind: input, shape index: {}]
  %s4 = inlined_call_operand.vmem [shape: f32[1,128], index: 4, kind: input, shape index: {}]
  %s5 = inlined_call_operand.hbm [shape: f32[2,16,128], index: 5, kind: output, shape index: {}]
  %s6 = sld [smem:[#allocation0]]
  $region73: #{tpu_custom_call.1} parent=0
    _
  %s8 = ssub.s32 1, %s6
  %s9 = scalar_select 0, %s8, %s6
  $region1: #{tpu_custom_call.1} parent=0
    #allocation4 [shape = 'u8[8192]{0}', space=vmem, size = 0x2000, scoped, tag = 'input window, operand 1, single buffered']
    #allocation5 [shape = 's32[2]{0}', space=sflag, size = 0x8, scoped, tag = 'scoped memory for tpu_custom_call.1']
    #allocation6 [shape = 's32[2]{0}', space=sflag, size = 0x8, scoped, tag = 'scoped memory for tpu_custom_call.1']
    #allocation7 [shape = 'u8[16384]{0}', space=vmem, size = 0x4000, scoped, tag = 'input window, operand 3, single buffered']
    #allocation8 [shape = 's32[1]{0}', space=sflag, size = 0x4, scoped, tag = 'scoped memory for tpu_custom_call.1']
    #allocation9 [shape = 'u8[16384]{0}', space=vmem, size = 0x4000, scoped, tag = 'output window, operand 0']
    %10 = vsyncpa [#allocation5], 0
    %11 = vsyncpa [#allocation8], 0
    %12 = vsyncpa [#allocation6], 0
    %s13 = scalar_lea.sflag [#allocation6], 1
    %14 = vsyncpa %s13, 0
    loop: start=0, step=1, limit=4
    $region2: #{tpu_custom_call.1} parent=1 // loop_pre_header
      _
    $region3: #{tpu_custom_call.1} parent=1 // loop_header
      %s16 = sphi 0, %s20
      %p17 = scmp.ge.s32.totalorder %s16, 4
      %s23 = sphi 0, %s35
      %s24 = sphi 0, %s31
      %s25 = sphi 0, %s23
      %s26 = sphi 0, %s24
      %s27 = sphi 0, %s25
      %s28 = sphi 0, %s26
      %s36 = sphi 0, %s36
      %s38 = sphi 0, %s36
      %s39 = sphi 0, %s38
      %s53 = sphi 0, %s39
      %s57 = sphi 0, %s57
      %s59 = sphi 0, %s57
      %s60 = sphi 0, %s59
      %s74 = sphi 0, %s60
      %s78 = sphi 0, %s78
      %s80 = sphi 0, %s78
      %s81 = sphi 0, %s80
      %s95 = sphi 0, %s81
      %s99 = sphi 0, %s99
      %s101 = sphi 0, %s99
      %s102 = sphi 0, %s101
      %s116 = sphi 0, %s102
      %s124 = sphi 0, %s126
      %s127 = sphi 0, %s124
      %s128 = sphi 0, %s127
      %s144 = sphi 0, %s128
    $region4: #{tpu_custom_call.1} parent=1 // loop_header_branch
      %19 = sbr.rel (%p17) target = $region8
    $region5: #{tpu_custom_call.1} parent=1 // loop_body
      %s21 = ssub.s32 %s16, 1
      %s22 = ssub.s32 %s16, 2
      %s29 = sadd.s32 1, %s24
      %p30 = scmp.ge.s32.totalorder %s29, 1
      %s31 = scalar_select %p30, 0, %s29
      %s32 = sadd.s32 1, %s23
      %s33 = scalar_select %p30, %s32, %s23
      %p34 = scmp.ge.s32.totalorder %s33, 2
      %s35 = scalar_select %p34, 0, %s33
      %s37 = sadd.s32 %s36, 1
      %p40 = scmp.eq.s32.totalorder %s16, 1
      %p41 = scmp.ne.s32.totalorder %s36, %s38
      %p42 = scmp.eq.s32.totalorder %s16, 0
      %p43 = por %p41, %p42
      %p44 = scmp.ne.s32.totalorder %s36, %s38
      %p45 = scmp.eq.s32.totalorder %s21, 1
      %p46 = por %p44, %p45
      %p47 = scmp.ne.s32.totalorder %s38, %s39
      %p48 = scmp.eq.s32.totalorder %s21, 0
      %p49 = por %p47, %p48
      %p50 = scmp.ne.s32.totalorder %s38, %s39
      %p51 = scmp.eq.s32.totalorder %s22, 1
      %p52 = por %p50, %p51
      %p54 = scmp.ne.s32.totalorder %s39, %s53
      %p55 = scmp.eq.s32.totalorder %s22, 0
      %p56 = por %p54, %p55
      %s58 = sadd.s32 %s57, 1
      %p61 = scmp.eq.s32.totalorder %s16, 1
      %p62 = scmp.ne.s32.totalorder %s57, %s59
      %p63 = scmp.eq.s32.totalorder %s16, 0
      %p64 = por %p62, %p63
      %p65 = scmp.ne.s32.totalorder %s57, %s59
      %p66 = scmp.eq.s32.totalorder %s21, 1
      %p67 = por %p65, %p66
      %p68 = scmp.ne.s32.totalorder %s59, %s60
      %p69 = scmp.eq.s32.totalorder %s21, 0
      %p70 = por %p68, %p69
      %p71 = scmp.ne.s32.totalorder %s59, %s60
      %p72 = scmp.eq.s32.totalorder %s22, 1
      %p73 = por %p71, %p72
      %p75 = scmp.ne.s32.totalorder %s60, %s74
      %p76 = scmp.eq.s32.totalorder %s22, 0
      %p77 = por %p75, %p76
      %s79 = sadd.s32 %s78, 1
      %p82 = scmp.eq.s32.totalorder %s16, 1
      %p83 = scmp.ne.s32.totalorder %s78, %s80
      %p84 = scmp.eq.s32.totalorder %s16, 0
      %p85 = por %p83, %p84
      %p86 = scmp.ne.s32.totalorder %s78, %s80
      %p87 = scmp.eq.s32.totalorder %s21, 1
      %p88 = por %p86, %p87
      %p89 = scmp.ne.s32.totalorder %s80, %s81
      %p90 = scmp.eq.s32.totalorder %s21, 0
      %p91 = por %p89, %p90
      %p92 = scmp.ne.s32.totalorder %s80, %s81
      %p93 = scmp.eq.s32.totalorder %s22, 1
      %p94 = por %p92, %p93
      %p96 = scmp.ne.s32.totalorder %s81, %s95
      %p97 = scmp.eq.s32.totalorder %s22, 0
      %p98 = por %p96, %p97
      %s100 = sadd.s32 %s99, 1
      %p103 = scmp.eq.s32.totalorder %s16, 1
      %p104 = scmp.ne.s32.totalorder %s99, %s101
      %p105 = scmp.eq.s32.totalorder %s16, 0
      %p106 = por %p104, %p105
      %p107 = scmp.ne.s32.totalorder %s99, %s101
      %p108 = scmp.eq.s32.totalorder %s21, 1
      %p109 = por %p107, %p108
      %p110 = scmp.ne.s32.totalorder %s101, %s102
      %p111 = scmp.eq.s32.totalorder %s21, 0
      %p112 = por %p110, %p111
      %p113 = scmp.ne.s32.totalorder %s101, %s102
      %p114 = scmp.eq.s32.totalorder %s22, 1
      %p115 = por %p113, %p114
      %p117 = scmp.ne.s32.totalorder %s102, %s116
      %p118 = scmp.eq.s32.totalorder %s22, 0
      %p119 = por %p117, %p118
      %s120 = ssub.s32 %s23, %s35
      %s121 = ssub.s32 %s24, %s31
      %s122 = sor.u32 %s120, %s121
      %p123 = scmp.eq.s32.totalorder %s122, 0
      %s125 = sadd.s32 %s124, 1
      %s126 = scalar_select %p123, %s124, %s125
      %p129 = pneg %p123
      %p130 = scmp.eq.s32.totalorder %s16, 1
      %p131 = por %p129, %p130
      %p132 = scmp.ne.s32.totalorder %s124, %s127
      %p133 = scmp.eq.s32.totalorder %s16, 0
      %p134 = por %p132, %p133
      %p135 = scmp.ne.s32.totalorder %s124, %s127
      %p136 = scmp.eq.s32.totalorder %s21, 1
      %p137 = por %p135, %p136
      %p138 = scmp.ne.s32.totalorder %s127, %s128
      %p139 = scmp.eq.s32.totalorder %s21, 0
      %p140 = por %p138, %p139
      %p141 = scmp.ne.s32.totalorder %s127, %s128
      %p142 = scmp.eq.s32.totalorder %s22, 1
      %p143 = por %p141, %p142
      %p145 = scmp.ne.s32.totalorder %s128, %s144
      %p146 = scmp.eq.s32.totalorder %s22, 0
      %p147 = por %p145, %p146
      %p148 = scmp.le.s32.totalorder 1, %s16
      %p149 = scmp.lt.s32.totalorder %s16, 3
      %p150 = pnand %p148, %p149
      %p151 = pneg %p150
      // Predicated region
      $region9: #{tpu_custom_call.1} parent=5 // pred_check
        _
      $region10: #{tpu_custom_call.1} parent=5 // pred_check_branch
        %153 = sbr.rel (%p150) target = $region12
      $region11: #{tpu_custom_call.1} parent=5 // pred_region
        %s154 = ssub.s32 %s16, 1
        // Predicated region
        $region13: #{tpu_custom_call.1} parent=11 // pred_check
          %p155 = pneg %p49
        $region14: #{tpu_custom_call.1} parent=11 // pred_check_branch
          %157 = sbr.rel (%p155) target = $region16
        $region15: #{tpu_custom_call.1} parent=11 // pred_region
          %s159 = ssub.s32 256, 256
          %160 = vsyncadd [#allocation5], %s159
          %s161 = sshll.u32 [#allocation4], 4
          %s162 = int_to_ptr.vmem [resolvable:$true] %s161
          %167 = dma.hbm_to_vmem [thread:$0]  %s1, 256, %s162, [#allocation5], 128, 128, 8
        $region16: #{tpu_custom_call.1} parent=11 // pred_fallthru
          _
        // Predicated region
        $region17: #{tpu_custom_call.1} parent=11 // pred_check
          %p168 = pneg %p70
        $region18: #{tpu_custom_call.1} parent=11 // pred_check_branch
          %170 = sbr.rel (%p168) target = $region20
        $region19: #{tpu_custom_call.1} parent=11 // pred_region
          _
        $region20: #{tpu_custom_call.1} parent=11 // pred_fallthru
          _
        // Predicated region
        $region21: #{tpu_custom_call.1} parent=11 // pred_check
          %p171 = pneg %p91
        $region22: #{tpu_custom_call.1} parent=11 // pred_check_branch
          %173 = sbr.rel (%p171) target = $region24
        $region23: #{tpu_custom_call.1} parent=11 // pred_region
          %s175 = ssub.s32 512, 512
          %176 = vsyncadd [#allocation8], %s175
          %s177 = sshll.u32 [#allocation7], 4
          %s178 = int_to_ptr.vmem [resolvable:$true] %s177
          %183 = dma.hbm_to_vmem [thread:$0]  %s3, 512, %s178, [#allocation8], 64, 64, 4
        $region24: #{tpu_custom_call.1} parent=11 // pred_fallthru
          _
        // Predicated region
        $region25: #{tpu_custom_call.1} parent=11 // pred_check
          %p184 = pneg %p112
        $region26: #{tpu_custom_call.1} parent=11 // pred_check_branch
          %186 = sbr.rel (%p184) target = $region28
        $region27: #{tpu_custom_call.1} parent=11 // pred_region
          _
        $region28: #{tpu_custom_call.1} parent=11 // pred_fallthru
          _
      $region12: #{tpu_custom_call.1} parent=5 // pred_fallthru
        _
      %p187 = scmp.lt.s32.totalorder %s16, 2
      // Predicated region
      $region29: #{tpu_custom_call.1} parent=5 // pred_check
        %p188 = pneg %p187
      $region30: #{tpu_custom_call.1} parent=5 // pred_check_branch
        %190 = sbr.rel (%p188) target = $region32
      $region31: #{tpu_custom_call.1} parent=5 // pred_region
        _
      $region32: #{tpu_custom_call.1} parent=5 // pred_fallthru
        _
      %p191 = scmp.le.s32.totalorder 1, %s16
      %p192 = scmp.lt.s32.totalorder %s16, 3
      %p193 = pnand %p191, %p192
      %p194 = pneg %p193
      // Predicated region
      $region33: #{tpu_custom_call.1} parent=5 // pred_check
        _
      $region34: #{tpu_custom_call.1} parent=5 // pred_check_branch
        %196 = sbr.rel (%p193) target = $region36
      $region35: #{tpu_custom_call.1} parent=5 // pred_region
        %s197 = ssub.s32 %s16, 1
        // Predicated region
        $region37: #{tpu_custom_call.1} parent=35 // pred_check
          %p198 = pneg %p49
        $region38: #{tpu_custom_call.1} parent=35 // pred_check_branch
          %200 = sbr.rel (%p198) target = $region40
        $region39: #{tpu_custom_call.1} parent=35 // pred_region
          %201 = dma.done [#allocation5], 256
        $region40: #{tpu_custom_call.1} parent=35 // pred_fallthru
          _
        // Predicated region
        $region41: #{tpu_custom_call.1} parent=35 // pred_check
          %p202 = pneg %p91
        $region42: #{tpu_custom_call.1} parent=35 // pred_check_branch
          %204 = sbr.rel (%p202) target = $region44
        $region43: #{tpu_custom_call.1} parent=35 // pred_region
          %205 = dma.done [#allocation8], 512
        $region44: #{tpu_custom_call.1} parent=35 // pred_fallthru
          _
        %p206 = pneg %p49
        %p207 = pneg %p46
        %p208 = pneg %p70
        %p209 = pneg %p67
        %p210 = pneg %p91
        %p211 = pneg %p88
        %p212 = pneg %p112
        %p213 = pneg %p109
        %p214 = pneg %p140
        %p215 = pneg %p137
        %s216 = sand.u32 %s127, 1
        %s217 = scalar_lea.sflag [#allocation6], %s216
        %s218 = sand.u32 %s127, 1
        %s219 = smul.addr %s218, 16
        %s220 = scalar_lea.vmem [#allocation9], %s219
        %s221 = smul.u32 2, %s26
        %p223 = scmp.lt.s32.totalorder %s26, 0
        %s224 = ssub.s32 0, %s26
        %s225 = scalar_select %p223, %s224, %s26
        %s226 = sand.u32 %s225, 1
        %s227 = ssub.s32 0, %s226
        %s228 = scalar_select %p223, %s227, %s226
        %p229 = scmp.eq.s32.totalorder %s26, 0
        // Predicated region
        $region45: #{tpu_custom_call.1} parent=35 // pred_check
          %p230 = pneg %p229
        $region46: #{tpu_custom_call.1} parent=35 // pred_check_branch
          %232 = sbr.rel (%p230) target = $region48
        $region47: #{tpu_custom_call.1} parent=35 // pred_region
          %s233 = smul.u32 %s25, 24
          %s234 = smul.addr %s233, 16
          %s235 = scalar_lea.hbm %s0, %s234
          // Predicated region
          $region49: #{tpu_custom_call.1} parent=47 // pred_check
            _
          $region50: #{tpu_custom_call.1} parent=47 // pred_check_branch
            %237 = sbr.rel target = $region52
          $region51: #{tpu_custom_call.1} parent=47 // pred_region
            %238 = sst [smem:[#allocation12]] [#allocation11]
            %239 = sst [smem:[#allocation13]] [#allocation10]
          $region52: #{tpu_custom_call.1} parent=47 // pred_fallthru
            _
          %241 = shalt.err (0)
          %s243 = sshll.u32 [#allocation2], 4
          %s244 = int_to_ptr.vmem [resolvable:$true] %s243
          %246 = dma.hbm_to_vmem [thread:$0]  %s235, 288, %s244, [#allocation3]
        $region48: #{tpu_custom_call.1} parent=35 // pred_fallthru
          _
        %s247 = sadd.s32 %s26, 1
        %p248 = scmp.lt.s32.totalorder %s247, 1
        // Predicated region
        $region53: #{tpu_custom_call.1} parent=35 // pred_check
          %p249 = pneg %p248
        $region54: #{tpu_custom_call.1} parent=35 // pred_check_branch
          %251 = sbr.rel (%p249) target = $region56
        $region55: #{tpu_custom_call.1} parent=35 // pred_region
          %s252 = ssub.s32 1, %s228
          %s253 = smul.u32 %s25, 24
          %s254 = smul.u32 %s247, 16
          %s255 = sadd.s32 %s253, %s254
          %s256 = smul.addr %s255, 16
          %s257 = scalar_lea.hbm %s0, %s256
          %s258 = smul.u32 %s252, 24
          %s259 = scalar_lea.vmem [#allocation2], %s258
          %s260 = scalar_lea.sflag [#allocation3], %s252
          // Predicated region
          $region57: #{tpu_custom_call.1} parent=55 // pred_check
            _
          $region58: #{tpu_custom_call.1} parent=55 // pred_check_branch
            %262 = sbr.rel target = $region60
          $region59: #{tpu_custom_call.1} parent=55 // pred_region
            %263 = sst [smem:[#allocation12]] [#allocation15]
            %264 = sst [smem:[#allocation13]] [#allocation14]
          $region60: #{tpu_custom_call.1} parent=55 // pred_fallthru
            _
          %266 = shalt.err (0)
          %s268 = sshll.u32 %s259, 4
          %s269 = int_to_ptr.vmem [resolvable:$true] %s268
          %271 = dma.hbm_to_vmem [thread:$0]  %s257, 288, %s269, %s260
        $region56: #{tpu_custom_call.1} parent=35 // pred_fallthru
          _
        %s272 = smul.u32 %s25, 24
        %s273 = smul.u32 %s26, 16
        %s274 = sadd.s32 %s272, %s273
        %s275 = smul.u32 %s228, 24
        %s276 = scalar_lea.vmem [#allocation2], %s275
        %s277 = scalar_lea.sflag [#allocation3], %s228
        %s278 = smul.u32 18, 1
        %s279 = sshll.u32 %s278, 4
        %280 = dma.done %s277, %s279
        %v281 = vld [vmem:[%s276] sm:$0xff]
        %v282 = vld [vmem:[%s276 + $0x8] sm:$0xff]
        %v283 = vld [vmem:[%s276 + $0x10] sm:$0x3]
        %v284 = vld [vmem:[#allocation4] sm:$0x1]
        %v285 = vlaneseq
        %v286 = vshrl.u32 %v285, 7
        %v287 = vsub.s32 0, %v286
        %v288 = vrot.slane %v284, %v287
        %v289 = vmul.f32 %v281, %v288
        %v290 = vmul.f32 %v282, %v288
        %v291 = vld [vmem:[#allocation4 + $0x1] sm:$0x1]
        %v292 = vlaneseq
        %v293 = vshrl.u32 %v292, 7
        %v294 = vsub.s32 0, %v293
        %v295 = vrot.slane %v291, %v294
        %297 = vrot.lane.b32.xlu0 %v295, 4
        %v298 = vpop.permute.xlu0 %297
        %v300 = vmul.f32 %v281, %v298
        %v301 = vmul.f32 %v282, %v298
        %304 = vrot.lane.b32.xlu0 %v300, 124
        %v305 = vpop.permute.xlu0 %304
        %306 = vrot.lane.b32.xlu0 %v301, 124
        %v307 = vpop.permute.xlu0 %306
        %v310 = vadd.f32 %v289, %v305
        %v311 = vadd.f32 %v290, %v307
        %v312 = vld [vmem:[#allocation4 + $0x2] sm:$0x1]
        %v313 = vlaneseq
        %v314 = vshrl.u32 %v313, 7
        %v315 = vsub.s32 0, %v314
        %v316 = vrot.slane %v312, %v315
        %318 = vrot.lane.b32.xlu0 %v316, 8
        %v319 = vpop.permute.xlu0 %318
        %v321 = vmul.f32 %v281, %v319
        %v322 = vmul.f32 %v282, %v319
        %325 = vrot.lane.b32.xlu0 %v321, 120
        %v326 = vpop.permute.xlu0 %325
        %327 = vrot.lane.b32.xlu0 %v322, 120
        %v328 = vpop.permute.xlu0 %327
        %v331 = vadd.f32 %v310, %v326
        %v332 = vadd.f32 %v311, %v328
        %v333 = vld [vmem:[#allocation4 + $0x3] sm:$0x1]
        %v334 = vlaneseq
        %v335 = vshrl.u32 %v334, 7
        %v336 = vsub.s32 0, %v335
        %v337 = vrot.slane %v333, %v336
        %v338 = vmul.f32 %v281, %v337
        %v339 = vmul.f32 %v282, %v337
        %v340 = vmul.f32 %v283, %v337
        %vm344 = vcmask 1046528
        %v345 = vrot.slane %v338, 1
        %v346 = vrot.slane %v339, 1
        %v347 = vsel %vm344, %v345, %v346
        %v348 = vrot.slane %v340, 1
        %v349 = vsel %vm344, %v346, %v348
        %v352 = vadd.f32 %v331, %v347
        %v353 = vadd.f32 %v332, %v349
        %v354 = vld [vmem:[#allocation4 + $0x4] sm:$0x1]
        %v355 = vlaneseq
        %v356 = vshrl.u32 %v355, 7
        %v357 = vsub.s32 0, %v356
        %v358 = vrot.slane %v354, %v357
        %360 = vrot.lane.b32.xlu0 %v358, 4
        %v361 = vpop.permute.xlu0 %360
        %v363 = vmul.f32 %v281, %v361
        %v364 = vmul.f32 %v282, %v361
        %v365 = vmul.f32 %v283, %v361
        %v369 = vrot.slane %v363, 1
        %v370 = vrot.slane %v364, 1
        %v371 = vsel %vm344, %v369, %v370
        %v372 = vrot.slane %v365, 1
        %v373 = vsel %vm344, %v370, %v372
        %374 = vrot.lane.b32.xlu0 %v371, 124
        %v375 = vpop.permute.xlu0 %374
        %376 = vrot.lane.b32.xlu0 %v373, 124
        %v377 = vpop.permute.xlu0 %376
        %v380 = vadd.f32 %v352, %v375
        %v381 = vadd.f32 %v353, %v377
        %v382 = vld [vmem:[#allocation4 + $0x5] sm:$0x1]
        %v383 = vlaneseq
        %v384 = vshrl.u32 %v383, 7
        %v385 = vsub.s32 0, %v384
        %v386 = vrot.slane %v382, %v385
        %388 = vrot.lane.b32.xlu0 %v386, 8
        %v389 = vpop.permute.xlu0 %388
        %v391 = vmul.f32 %v281, %v389
        %v392 = vmul.f32 %v282, %v389
        %v393 = vmul.f32 %v283, %v389
        %v397 = vrot.slane %v391, 1
        %v398 = vrot.slane %v392, 1
        %v399 = vsel %vm344, %v397, %v398
        %v400 = vrot.slane %v393, 1
        %v401 = vsel %vm344, %v398, %v400
        %402 = vrot.lane.b32.xlu0 %v399, 120
        %v403 = vpop.permute.xlu0 %402
        %404 = vrot.lane.b32.xlu0 %v401, 120
        %v405 = vpop.permute.xlu0 %404
        %v408 = vadd.f32 %v380, %v403
        %v409 = vadd.f32 %v381, %v405
        %v410 = vld [vmem:[#allocation4 + $0x6] sm:$0x1]
        %v411 = vlaneseq
        %v412 = vshrl.u32 %v411, 7
        %v413 = vsub.s32 0, %v412
        %v414 = vrot.slane %v410, %v413
        %v415 = vmul.f32 %v281, %v414
        %v416 = vmul.f32 %v282, %v414
        %v417 = vmul.f32 %v283, %v414
        %vm421 = vcmask 1045504
        %v422 = vrot.slane %v415, 2
        %v423 = vrot.slane %v416, 2
        %v424 = vsel %vm421, %v422, %v423
        %v425 = vrot.slane %v417, 2
        %v426 = vsel %vm421, %v423, %v425
        %v429 = vadd.f32 %v408, %v424
        %v430 = vadd.f32 %v409, %v426
        %v431 = vld [vmem:[#allocation4 + $0x7] sm:$0x1]
        %v432 = vlaneseq
        %v433 = vshrl.u32 %v432, 7
        %v434 = vsub.s32 0, %v433
        %v435 = vrot.slane %v431, %v434
        %437 = vrot.lane.b32.xlu0 %v435, 4
        %v438 = vpop.permute.xlu0 %437
        %v440 = vmul.f32 %v281, %v438
        %v441 = vmul.f32 %v282, %v438
        %v442 = vmul.f32 %v283, %v438
        %v446 = vrot.slane %v440, 2
        %v447 = vrot.slane %v441, 2
        %v448 = vsel %vm421, %v446, %v447
        %v449 = vrot.slane %v442, 2
        %v450 = vsel %vm421, %v447, %v449
        %451 = vrot.lane.b32.xlu0 %v448, 124
        %v452 = vpop.permute.xlu0 %451
        %453 = vrot.lane.b32.xlu0 %v450, 124
        %v454 = vpop.permute.xlu0 %453
        %v457 = vadd.f32 %v429, %v452
        %v458 = vadd.f32 %v430, %v454
        %v459 = vld [vmem:[#allocation4 + $0x8] sm:$0x1]
        %v460 = vlaneseq
        %v461 = vshrl.u32 %v460, 7
        %v462 = vsub.s32 0, %v461
        %v463 = vrot.slane %v459, %v462
        %465 = vrot.lane.b32.xlu0 %v463, 8
        %v466 = vpop.permute.xlu0 %465
        %v468 = vmul.f32 %v281, %v466
        %v469 = vmul.f32 %v282, %v466
        %v470 = vmul.f32 %v283, %v466
        %v474 = vrot.slane %v468, 2
        %v475 = vrot.slane %v469, 2
        %v476 = vsel %vm421, %v474, %v475
        %v477 = vrot.slane %v470, 2
        %v478 = vsel %vm421, %v475, %v477
        %479 = vrot.lane.b32.xlu0 %v476, 120
        %v480 = vpop.permute.xlu0 %479
        %481 = vrot.lane.b32.xlu0 %v478, 120
        %v482 = vpop.permute.xlu0 %481
        %v485 = vadd.f32 %v457, %v480
        %v486 = vadd.f32 %v458, %v482
        %v487 = vld [vmem:[%s2] sm:$0x1]
        %v489 = vlaneseq
        %v490 = vshrl.u32 %v489, 7
        %v491 = vsub.s32 0, %v490
        %v492 = vrot.slane %v487, %v491
        %v494 = vadd.f32 %v485, %v492
        %v495 = vadd.f32 %v486, %v492
        %v496 = vmax.f32 %v494, 0.0
        %v497 = vmax.f32 %v495, 0.0
        %v498 = vpack.c.bf16 %v497, %v496
        %v499 = vld [vmem:[#allocation7] sm:$0xf]
        %v500 = vld [vmem:[#allocation7 + $0x4] sm:$0xf]
        %v501 = vld [vmem:[#allocation7 + $0x8] sm:$0xf]
        %v502 = vld [vmem:[#allocation7 + $0xc] sm:$0xf]
        %v503 = vld [vmem:[#allocation7 + $0x10] sm:$0xf]
        %v504 = vld [vmem:[#allocation7 + $0x14] sm:$0xf]
        %v505 = vld [vmem:[#allocation7 + $0x18] sm:$0xf]
        %v506 = vld [vmem:[#allocation7 + $0x1c] sm:$0xf]
        %v507 = vld [vmem:[%s4] sm:$0x1]
        %v509 = vlaneseq
        %v510 = vshrl.u32 %v509, 7
        %v511 = vsub.s32 0, %v510
        %v512 = vrot.slane %v507, %v511
        %v522 = vunpack.c.l.b16 %v499
        %v523 = vunpack.c.l.b16 %v500
        %v524 = vunpack.c.l.b16 %v501
        %v525 = vunpack.c.l.b16 %v502
        %v526 = vunpack.c.l.b16 %v503
        %v527 = vunpack.c.l.b16 %v504
        %v528 = vunpack.c.l.b16 %v505
        %v529 = vunpack.c.l.b16 %v506
        %v530 = vpack.c.b16 %v523, %v522
        %v531 = vpack.c.b16 %v525, %v524
        %v532 = vpack.c.b16 %v527, %v526
        %v533 = vpack.c.b16 %v529, %v528
        %vm538 = vcmask 523264
        %v540 = vsel %vm538, %v498, 0
        %542 = vmatprep.subr.bf16.mxu0 0
        %543 = vmatpush1.bf16.msra.mxu0 0
        %544 = vmatprep.subr.bf16.mxu0 0
        %545 = vmatpush1.bf16.msra.mxu0 0
        %546 = vmatprep.subr.bf16.mxu0 0
        %547 = vmatpush1.bf16.msra.mxu0 0
        %548 = vmatprep.subr.bf16.mxu0 0
        %549 = vmatpush1.bf16.msra.mxu0 0
        %550 = vmatprep.subr.bf16.mxu0 0
        %551 = vmatpush1.bf16.msra.mxu0 %v533
        %552 = vmatprep.subr.bf16.mxu0 0
        %553 = vmatpush1.bf16.msra.mxu0 %v532
        %554 = vmatprep.subr.bf16.mxu0 0
        %555 = vmatpush1.bf16.msra.mxu0 %v531
        %556 = vmatprep.subr.bf16.mxu0 0
        %557 = vmatpush1.bf16.msra.mxu0 %v530
        %558 = vmatprep.subr.bf16.mxu0 0
        %559 = vmatpush2.bf16.msra.mxu0 0
        %560 = vmatprep.subr.bf16.mxu0 0
        %561 = vmatpush2.bf16.msra.mxu0 0
        %562 = vmatprep.subr.bf16.mxu0 0
        %563 = vmatpush2.bf16.msra.mxu0 0
        %564 = vmatprep.subr.bf16.mxu0 0
        %565 = vmatpush2.bf16.msra.mxu0 0
        %566 = vmatprep.subr.bf16.mxu0 0
        %567 = vmatpush2.bf16.msra.mxu0 0
        %568 = vmatprep.subr.bf16.mxu0 0
        %569 = vmatpush2.bf16.msra.mxu0 0
        %570 = vmatprep.subr.bf16.mxu0 0
        %571 = vmatpush2.bf16.msra.mxu0 0
        %572 = vmatprep.subr.bf16.mxu0 0
        %573 = vmatpush2.bf16.msra.mxu0 0
        %574 = vmatprep.mubr.bf16.mxu0 0
        %575 = vmatmul.mubr.bf16.gmra.mxu0 %v540
        %v576 = vpop.f32.mrf.mxu0
        %v577 = vadd.f32 %v512, %v576
        %v578 = vpop.f32.mrf.mxu0
        %v579 = vpop.f32.mrf.mxu0
        %v580 = vadd.f32 %v512, %v579
        %v581 = vpop.f32.mrf.mxu0
        %582 = vdwg.mxu0
        %583 = vst [vmem:[%s220] sm:$0xff] %v577
        %584 = vst [vmem:[%s220 + $0x8] sm:$0xff] %v580
        %s585 = sand.u32 %s127, 1
        %s586 = scalar_lea.sflag [#allocation6], %s585
        %s587 = sand.u32 %s127, 1
        %s588 = smul.addr %s587, 16
        %s589 = scalar_lea.vmem [#allocation9], %s588
        // Predicated region
        $region61: #{tpu_custom_call.1} parent=35 // pred_check
          %p590 = pneg %p137
        $region62: #{tpu_custom_call.1} parent=35 // pred_check_branch
          %592 = sbr.rel (%p590) target = $region64
        $region63: #{tpu_custom_call.1} parent=35 // pred_region
          %s593 = smul.u32 2, %s26
          %s595 = ssub.s32 256, 256
          %596 = vsyncadd %s586, %s595
          %s597 = smul.addr %s25, 2
          %s598 = sadd.s32 %s593, %s597
          %s599 = smul.addr %s598, 128
          %s600 = scalar_lea.hbm %s5, %s599
          %s601 = sshll.u32 %s589, 4
          %s602 = int_to_ptr.vmem [resolvable:$true] %s601
          %607 = dma.vmem_to_hbm [thread:$0]  %s602, 256, %s600, %s586, 128, 128, 8
        $region64: #{tpu_custom_call.1} parent=35 // pred_fallthru
          _
      $region36: #{tpu_custom_call.1} parent=5 // pred_fallthru
        _
      %p608 = scmp.le.s32.totalorder 2, %s16
      // Predicated region
      $region65: #{tpu_custom_call.1} parent=5 // pred_check
        %p609 = pneg %p608
      $region66: #{tpu_custom_call.1} parent=5 // pred_check_branch
        %611 = sbr.rel (%p609) target = $region68
      $region67: #{tpu_custom_call.1} parent=5 // pred_region
        %s612 = ssub.s32 %s16, 2
        // Predicated region
        $region69: #{tpu_custom_call.1} parent=67 // pred_check
          %p613 = pneg %p143
        $region70: #{tpu_custom_call.1} parent=67 // pred_check_branch
          %615 = sbr.rel (%p613) target = $region72
        $region71: #{tpu_custom_call.1} parent=67 // pred_region
          %s616 = sand.u32 %s128, 1
          %s617 = scalar_lea.sflag [#allocation6], %s616
          %s618 = sand.u32 %s128, 1
          %s619 = smul.addr %s618, 16
          %s620 = scalar_lea.vmem [#allocation9], %s619
          %621 = dma.done %s617, 256
        $region72: #{tpu_custom_call.1} parent=67 // pred_fallthru
          _
      $region68: #{tpu_custom_call.1} parent=5 // pred_fallthru
        _
    $region6: #{tpu_custom_call.1} parent=1 // loop_footer
      %s20 = sadd.s32 1, %s16
    $region7: #{tpu_custom_call.1} parent=1 // loop_footer_branch
      %15 = sbr.rel target = $region3
    $region8: #{tpu_custom_call.1} parent=1 // loop_exit
      _
    %622 = vsyncpa [#allocation5], 1
    %s623 = scalar_lea.sflag [#allocation5], 1
    %624 = vsyncpa %s623, 1
    %625 = vsyncpa [#allocation8], 1
    %626 = vsyncpa [#allocation6], 1
    %s627 = scalar_lea.sflag [#allocation6], 1
    %628 = vsyncpa %s627, 1
  %629 = vsyncmov [#allocation3]
  %s630 = vpop.sfrf %629
  %p631 = scmp.eq.s32.totalorder %s630, 0
  %p632 = pneg %p631
  %634 = shalt.err (%p632)
  %s635 = scalar_lea.sflag [#allocation3], 1
  %636 = vsyncmov %s635
  %s637 = vpop.sfrf %636
  %p638 = scmp.eq.s32.totalorder %s637, 0
  %p639 = pneg %p638
  %641 = shalt.err (%p639)

</llo_original>
